<compile_context>
chip_gen: v6e
topology: v6e:2x2x1
jax: 0.10.0
libtpu: 0.0.40
codegen_flags: <defaults>
</compile_context>

<pallas_src>
import functools

import jax
import jax.numpy as jnp
from jax import lax
from jax.experimental import pallas as pl
from jax.experimental.pallas import tpu as pltpu


def _round_up(x, m):
    return (x + m - 1) // m * m


def _pick_time_chunk(T, Bp, Hp, max_scratch_bytes=4 << 20):
    """Largest divisor Tc of T whose (Tc*Bp, Hp) f32 scratch fits the budget.

    When more than one chunk is used, Tc*Bp must be a multiple of 128 so the lane-dense
    output block (O, Tc*Bp) satisfies the (8, 128) BlockSpec rule.
    """
    max_rows = max(Bp, max_scratch_bytes // (Hp * 4))
    candidates = []
    for tc in range(1, T + 1):
        if T % tc:
            continue
        if tc * Bp > max_rows:
            continue
        if tc != T and (tc * Bp) % 128 != 0:
            continue
        candidates.append(tc)
    return max(candidates) if candidates else T


def rnn_fused_kernel(x_ref, w_ih_ref, w_hh_ref, b_ref, w_lin_ref, b_lin_ref,
                     out_ref, buf_ref, h_ref):
    """One time-chunk of the fused Elman RNN (tanh) + Linear.

    x_ref:     (Tc*Bp, Dp)  padded, time-major flattened input chunk (row = t*Bp + b)
    w_ih_ref:  (Dp, Hp)     = W_ih^T (zero-padded)
    w_hh_ref:  (Hp, Hp)     = W_hh^T (zero-padded)
    b_ref:     (1, Hp)      = b_ih + b_hh (zero-padded)
    w_lin_ref: (O, Hp)      = W_lin (zero-padded on H)
    b_lin_ref: (O, 1)
    out_ref:   (O, Tc*Bp)   lane-dense transposed output slab (col = t*Bp + b)
    buf_ref:   (Tc*Bp, Hp)  VMEM scratch: holds xproj, overwritten in place with h_t
    h_ref:     (Bp, Hp)     VMEM scratch: hidden state carried across time-chunks
    """
    Bp, Hp = h_ref.shape
    Tc = x_ref.shape[0] // Bp

    @pl.when(pl.program_id(0) == 0)
    def _():
        h_ref[...] = jnp.zeros_like(h_ref)

    # --- Hoisted input projection: one big MXU matmul for the whole chunk. ---
    buf_ref[...] = jnp.dot(x_ref[...], w_ih_ref[...],
                           preferred_element_type=jnp.float32) + b_ref[...]

    # --- Recurrence: only  h = tanh(xproj[t] + h @ W_hh)  per step. ---
    w_hh = w_hh_ref[...]

    def step(t, h):
        row = pl.multiple_of(t * Bp, 8)
        pre = buf_ref[pl.ds(row, Bp), :] + jnp.dot(
            h.astype(w_hh.dtype), w_hh, preferred_element_type=jnp.float32)
        h_new = jnp.tanh(pre)
        buf_ref[pl.ds(row, Bp), :] = h_new   # reuse the dead xproj slot to stash h_t
        return h_new

    unroll = Tc if Tc <= 16 else max(u for u in (8, 4, 2, 1) if Tc % u == 0)
    h_ref[...] = lax.fori_loop(0, Tc, step, h_ref[...], unroll=unroll)

    # --- Hoisted output Linear: one matmul + one lane-dense store per chunk. ---
    h_flat = buf_ref[...].astype(w_lin_ref.dtype)
    y_t = lax.dot_general(w_lin_ref[...], h_flat,
                          dimension_numbers=(((1,), (1,)), ((), ())),
                          preferred_element_type=jnp.float32)        # (O, Tc*Bp)
    out_ref[...] = (y_t + b_lin_ref[...]).astype(out_ref.dtype)


@functools.partial(jax.jit, static_argnames=("matmul_dtype",))
def rnn_model_forward(x, w_ih, w_hh, b_ih, b_hh, w_lin, b_lin,
                      matmul_dtype=jnp.float32):
    """x: (B, T, D_in) -> (B, T, O).  Matches torch: y, _ = nn.RNN(x); y = Linear(y).

    On v6e/v7x pass matmul_dtype=jnp.bfloat16 to feed the MXU bf16 operands
    (accumulation and the tanh path stay f32).  Keep f32 on v5e elementwise units.
    """
    B, T, D_in = x.shape
    H = w_hh.shape[0]
    O = w_lin.shape[0]

    Bp = _round_up(B, 8)        # f32 sublane multiple
    Hp = _round_up(H, 128)      # lane multiple -> unmasked vregs, dense MXU tiles
    Dp = _round_up(D_in, 8)
    Tc = _pick_time_chunk(T, Bp, Hp)
    n_chunks = T // Tc

    # Pad + go time-major + flatten to (T*Bp, Dp) so the kernel never reshapes.
    # x is the smallest tensor (D_in << H); XLA fuses the pad/transpose into one copy.
    x_tm = jnp.transpose(x, (1, 0, 2))
    x_p = jnp.pad(x_tm, ((0, 0), (0, Bp - B), (0, Dp - D_in)))
    x_p = x_p.reshape(T * Bp, Dp).astype(matmul_dtype)

    w_ih_t = jnp.pad(jnp.transpose(w_ih), ((0, Dp - D_in), (0, Hp - H))).astype(matmul_dtype)
    w_hh_t = jnp.pad(jnp.transpose(w_hh), ((0, Hp - H), (0, Hp - H))).astype(matmul_dtype)
    w_lin_p = jnp.pad(w_lin, ((0, 0), (0, Hp - H))).astype(matmul_dtype)
    b_comb = jnp.pad((b_ih + b_hh).reshape(1, H), ((0, 0), (0, Hp - H))).astype(jnp.float32)
    b_lin_p = b_lin.reshape(O, 1).astype(jnp.float32)

    grid_spec = pltpu.PrefetchScalarGridSpec(
        num_scalar_prefetch=0,
        grid=(n_chunks,),
        in_specs=[
            pl.BlockSpec((Tc * Bp, Dp), lambda t: (t, 0)),   # x: pipelined over time-chunks
            pl.BlockSpec((Dp, Hp), lambda t: (0, 0)),        # weights stay VMEM-resident
            pl.BlockSpec((Hp, Hp), lambda t: (0, 0)),
            pl.BlockSpec((1, Hp), lambda t: (0, 0)),
            pl.BlockSpec((O, Hp), lambda t: (0, 0)),
            pl.BlockSpec((O, 1), lambda t: (0, 0)),
        ],
        out_specs=pl.BlockSpec((O, Tc * Bp), lambda t: (0, t)),
        scratch_shapes=[
            pltpu.VMEM((Tc * Bp, Hp), jnp.float32),   # xproj / h_t chunk buffer
            pltpu.VMEM((Bp, Hp), jnp.float32),        # hidden-state carry across chunks
        ],
    )

    out_t = pl.pallas_call(
        rnn_fused_kernel,
        out_shape=jax.ShapeDtypeStruct((O, T * Bp), jnp.float32),
        grid_spec=grid_spec,
        compiler_params=pltpu.CompilerParams(
            # Recurrent carry across time-chunks => sequential grid axis.
            dimension_semantics=("arbitrary",),
        ),
    )(x_p, w_ih_t, w_hh_t, b_comb, w_lin_p, b_lin_p)

    # (O, T*Bp) with column index t*Bp + b  ->  (B, T, O), dropping batch padding.
    out = jnp.transpose(out_t.reshape(O, T, Bp), (2, 1, 0))[:B]
    return out


def init_params(key, input_size, hidden_size, output_size):
    """Deterministic PyTorch-style uniform(-1/sqrt(H), 1/sqrt(H)) init."""
    k = 1.0 / jnp.sqrt(jnp.float32(hidden_size))
    keys = jax.random.split(key, 6)
    w_ih = jax.random.uniform(keys[0], (hidden_size, input_size), jnp.float32, -k, k)
    w_hh = jax.random.uniform(keys[1], (hidden_size, hidden_size), jnp.float32, -k, k)
    b_ih = jax.random.uniform(keys[2], (hidden_size,), jnp.float32, -k, k)
    b_hh = jax.random.uniform(keys[3], (hidden_size,), jnp.float32, -k, k)
    w_lin = jax.random.uniform(keys[4], (output_size, hidden_size), jnp.float32, -k, k)
    b_lin = jax.random.uniform(keys[5], (output_size,), jnp.float32, -k, k)
    return w_ih, w_hh, b_ih, b_hh, w_lin, b_lin


if __name__ == "__main__":
    # Small shapes consistent with the module: batch=2, seq=8, input=4, hidden=32, output=1.
    B, T, D_in, H, O = 2, 8, 4, 32, 1

    key = jax.random.PRNGKey(0)
    k_x, k_p = jax.random.split(key)
    x = jax.random.normal(k_x, (B, T, D_in), dtype=jnp.float32)
    params = init_params(k_p, D_in, H, O)

    y = rnn_model_forward(x, *params)
    jax.block_until_ready(y)
    assert y.shape == (B, T, O), y.shape

    # Pure-JAX reference (same recurrence) to validate the kernel.
    w_ih, w_hh, b_ih, b_hh, w_lin, b_lin = params

    def ref_forward(x):
        def step(h, xt):
            h_new = jnp.tanh(xt @ w_ih.T + h @ w_hh.T + b_ih + b_hh)
            return h_new, h_new
        h0 = jnp.zeros((x.shape[0], H), jnp.float32)
        _, hs = lax.scan(step, h0, jnp.transpose(x, (1, 0, 2)))   # (T, B, H)
        hs = jnp.transpose(hs, (1, 0, 2))                         # (B, T, H)
        return hs @ w_lin.T + b_lin

    y_ref = ref_forward(x)
    err = float(jnp.max(jnp.abs(y - y_ref)))
    assert jnp.allclose(y, y_ref, atol=1e-4, rtol=1e-4), err

    print("KERNEL_OK")
</pallas_src>

<mosaic_0001>
module attributes {stable_mosaic.version = 11 : i64} {
  func.func @rnn_fused_kernel(%arg0: i32, %arg1: memref<64x8xf32, #tpu.memory_space<vmem>>, %arg2: memref<8x128xf32, #tpu.memory_space<vmem>>, %arg3: memref<128x128xf32, #tpu.memory_space<vmem>>, %arg4: memref<1x128xf32, #tpu.memory_space<vmem>>, %arg5: memref<1x128xf32, #tpu.memory_space<vmem>>, %arg6: memref<1x1xf32, #tpu.memory_space<vmem>>, %arg7: memref<1x64xf32, #tpu.memory_space<vmem>>, %arg8: memref<64x128xf32, #tpu.memory_space<vmem>>, %arg9: memref<8x128xf32, #tpu.memory_space<vmem>>) attributes {dimension_semantics = [#tpu.dimension_semantics<arbitrary>], iteration_bounds = array<i64: 1>, scalar_prefetch = 0 : i64, scratch_operands = 2 : i64, tpu.core_type = #tpu.core_type<tc>, window_params = [{transform_indices = @transform_0, window_bounds = array<i64: 64, 8>}, {pipeline_mode = #tpu.pipeline_mode<synchronous>, transform_indices = @transform_1, window_bounds = array<i64: 8, 128>}, {pipeline_mode = #tpu.pipeline_mode<synchronous>, transform_indices = @transform_2, window_bounds = array<i64: 128, 128>}, {pipeline_mode = #tpu.pipeline_mode<synchronous>, transform_indices = @transform_3, window_bounds = array<i64: 1, 128>}, {pipeline_mode = #tpu.pipeline_mode<synchronous>, transform_indices = @transform_4, window_bounds = array<i64: 1, 128>}, {pipeline_mode = #tpu.pipeline_mode<synchronous>, transform_indices = @transform_5, window_bounds = array<i64: 1, 1>}, {transform_indices = @transform_6, window_bounds = array<i64: 1, 64>}]} {
    %c0_i32 = arith.constant 0 : i32
    %0 = arith.cmpi eq, %arg0, %c0_i32 : i32
    %1 = arith.extui %0 : i1 to i32
    %c0_i32_0 = arith.constant 0 : i32
    %2 = arith.cmpi ne, %1, %c0_i32_0 : i32
    scf.if %2 {
      %cst_56 = arith.constant 0.000000e+00 : f32
      %92 = vector.broadcast %cst_56 : f32 to vector<8x128xf32>
      %c0_57 = arith.constant 0 : index
      %c0_58 = arith.constant 0 : index
      %93 = vector.load %arg9[%c0_57, %c0_58] : memref<8x128xf32, #tpu.memory_space<vmem>>, vector<8x128xf32>
      tpu.vector_store %arg9[%c0_57, %c0_58], %92 {strides = array<i32>} : memref<8x128xf32, #tpu.memory_space<vmem>>, vector<8x128xf32>,
    } else {
    }
    %c0 = arith.constant 0 : index
    %c0_1 = arith.constant 0 : index
    %3 = vector.load %arg1[%c0, %c0_1] : memref<64x8xf32, #tpu.memory_space<vmem>>, vector<64x8xf32>
    %c0_2 = arith.constant 0 : index
    %c0_3 = arith.constant 0 : index
    %4 = vector.load %arg2[%c0_2, %c0_3] : memref<8x128xf32, #tpu.memory_space<vmem>>, vector<8x128xf32>
    %cst = arith.constant dense<0.000000e+00> : vector<64x128xf32>
    %5 = tpu.matmul %3, %4, %cst {dimension_numbers = #tpu.dot_dimension_numbers<[1], [0], [0], [1], [0, 0, 1, 1], [], []>} : vector<64x8xf32>, vector<8x128xf32>, vector<64x128xf32> -> vector<64x128xf32>
    %c0_4 = arith.constant 0 : index
    %c0_5 = arith.constant 0 : index
    %6 = vector.load %arg4[%c0_4, %c0_5] : memref<1x128xf32, #tpu.memory_space<vmem>>, vector<1x128xf32>
    %7 = vector.broadcast %6 : vector<1x128xf32> to vector<64x128xf32>
    %8 = arith.addf %5, %7 : vector<64x128xf32>
    %c0_6 = arith.constant 0 : index
    %c0_7 = arith.constant 0 : index
    %9 = vector.load %arg8[%c0_6, %c0_7] : memref<64x128xf32, #tpu.memory_space<vmem>>, vector<64x128xf32>
    tpu.vector_store %arg8[%c0_6, %c0_7], %8 {strides = array<i32>} : memref<64x128xf32, #tpu.memory_space<vmem>>, vector<64x128xf32>,
    %c0_8 = arith.constant 0 : index
    %c0_9 = arith.constant 0 : index
    %10 = vector.load %arg3[%c0_8, %c0_9] : memref<128x128xf32, #tpu.memory_space<vmem>>, vector<128x128xf32>
    %c0_10 = arith.constant 0 : index
    %c0_11 = arith.constant 0 : index
    %11 = vector.load %arg9[%c0_10, %c0_11] : memref<8x128xf32, #tpu.memory_space<vmem>>, vector<8x128xf32>
    %c0_i32_12 = arith.constant 0 : i32
    %c8_i32 = arith.constant 8 : i32
    %12 = arith.muli %c0_i32_12, %c8_i32 : i32
    %13 = tpu.assume_multiple %12, 8 : i32
    %14 = arith.index_cast %13 : i32 to index
    %c0_13 = arith.constant 0 : index
    %15 = vector.load %arg8[%14, %c0_13] : memref<64x128xf32, #tpu.memory_space<vmem>>, vector<8x128xf32>
    %cst_14 = arith.constant dense<0.000000e+00> : vector<8x128xf32>
    %16 = tpu.matmul %11, %10, %cst_14 {dimension_numbers = #tpu.dot_dimension_numbers<[1], [0], [0], [1], [0, 0, 1, 1], [], []>} : vector<8x128xf32>, vector<128x128xf32>, vector<8x128xf32> -> vector<8x128xf32>
    %17 = arith.addf %15, %16 : vector<8x128xf32>
    %18 = math.tanh %17 : vector<8x128xf32>
    %19 = arith.index_cast %13 : i32 to index
    %c0_15 = arith.constant 0 : index
    %20 = vector.load %arg8[%19, %c0_15] : memref<64x128xf32, #tpu.memory_space<vmem>>, vector<8x128xf32>
    tpu.vector_store %arg8[%19, %c0_15], %18 {strides = array<i32>} : memref<64x128xf32, #tpu.memory_space<vmem>>, vector<8x128xf32>,
    %c1_i32 = arith.constant 1 : i32
    %c8_i32_16 = arith.constant 8 : i32
    %21 = arith.muli %c1_i32, %c8_i32_16 : i32
    %22 = tpu.assume_multiple %21, 8 : i32
    %23 = arith.index_cast %22 : i32 to index
    %c0_17 = arith.constant 0 : index
    %24 = vector.load %arg8[%23, %c0_17] : memref<64x128xf32, #tpu.memory_space<vmem>>, vector<8x128xf32>
    %cst_18 = arith.constant dense<0.000000e+00> : vector<8x128xf32>
    %25 = tpu.matmul %18, %10, %cst_18 {dimension_numbers = #tpu.dot_dimension_numbers<[1], [0], [0], [1], [0, 0, 1, 1], [], []>} : vector<8x128xf32>, vector<128x128xf32>, vector<8x128xf32> -> vector<8x128xf32>
    %26 = arith.addf %24, %25 : vector<8x128xf32>
    %27 = math.tanh %26 : vector<8x128xf32>
    %28 = arith.index_cast %22 : i32 to index
    %c0_19 = arith.constant 0 : index
    %29 = vector.load %arg8[%28, %c0_19] : memref<64x128xf32, #tpu.memory_space<vmem>>, vector<8x128xf32>
    tpu.vector_store %arg8[%28, %c0_19], %27 {strides = array<i32>} : memref<64x128xf32, #tpu.memory_space<vmem>>, vector<8x128xf32>,
    %c2_i32 = arith.constant 2 : i32
    %c8_i32_20 = arith.constant 8 : i32
    %30 = arith.muli %c2_i32, %c8_i32_20 : i32
    %31 = tpu.assume_multiple %30, 8 : i32
    %32 = arith.index_cast %31 : i32 to index
    %c0_21 = arith.constant 0 : index
    %33 = vector.load %arg8[%32, %c0_21] : memref<64x128xf32, #tpu.memory_space<vmem>>, vector<8x128xf32>
    %cst_22 = arith.constant dense<0.000000e+00> : vector<8x128xf32>
    %34 = tpu.matmul %27, %10, %cst_22 {dimension_numbers = #tpu.dot_dimension_numbers<[1], [0], [0], [1], [0, 0, 1, 1], [], []>} : vector<8x128xf32>, vector<128x128xf32>, vector<8x128xf32> -> vector<8x128xf32>
    %35 = arith.addf %33, %34 : vector<8x128xf32>
    %36 = math.tanh %35 : vector<8x128xf32>
    %37 = arith.index_cast %31 : i32 to index
    %c0_23 = arith.constant 0 : index
    %38 = vector.load %arg8[%37, %c0_23] : memref<64x128xf32, #tpu.memory_space<vmem>>, vector<8x128xf32>
    tpu.vector_store %arg8[%37, %c0_23], %36 {strides = array<i32>} : memref<64x128xf32, #tpu.memory_space<vmem>>, vector<8x128xf32>,
    %c3_i32 = arith.constant 3 : i32
    %c8_i32_24 = arith.constant 8 : i32
    %39 = arith.muli %c3_i32, %c8_i32_24 : i32
    %40 = tpu.assume_multiple %39, 8 : i32
    %41 = arith.index_cast %40 : i32 to index
    %c0_25 = arith.constant 0 : index
    %42 = vector.load %arg8[%41, %c0_25] : memref<64x128xf32, #tpu.memory_space<vmem>>, vector<8x128xf32>
    %cst_26 = arith.constant dense<0.000000e+00> : vector<8x128xf32>
    %43 = tpu.matmul %36, %10, %cst_26 {dimension_numbers = #tpu.dot_dimension_numbers<[1], [0], [0], [1], [0, 0, 1, 1], [], []>} : vector<8x128xf32>, vector<128x128xf32>, vector<8x128xf32> -> vector<8x128xf32>
    %44 = arith.addf %42, %43 : vector<8x128xf32>
    %45 = math.tanh %44 : vector<8x128xf32>
    %46 = arith.index_cast %40 : i32 to index
    %c0_27 = arith.constant 0 : index
    %47 = vector.load %arg8[%46, %c0_27] : memref<64x128xf32, #tpu.memory_space<vmem>>, vector<8x128xf32>
    tpu.vector_store %arg8[%46, %c0_27], %45 {strides = array<i32>} : memref<64x128xf32, #tpu.memory_space<vmem>>, vector<8x128xf32>,
    %c4_i32 = arith.constant 4 : i32
    %c8_i32_28 = arith.constant 8 : i32
    %48 = arith.muli %c4_i32, %c8_i32_28 : i32
    %49 = tpu.assume_multiple %48, 8 : i32
    %50 = arith.index_cast %49 : i32 to index
    %c0_29 = arith.constant 0 : index
    %51 = vector.load %arg8[%50, %c0_29] : memref<64x128xf32, #tpu.memory_space<vmem>>, vector<8x128xf32>
    %cst_30 = arith.constant dense<0.000000e+00> : vector<8x128xf32>
    %52 = tpu.matmul %45, %10, %cst_30 {dimension_numbers = #tpu.dot_dimension_numbers<[1], [0], [0], [1], [0, 0, 1, 1], [], []>} : vector<8x128xf32>, vector<128x128xf32>, vector<8x128xf32> -> vector<8x128xf32>
    %53 = arith.addf %51, %52 : vector<8x128xf32>
    %54 = math.tanh %53 : vector<8x128xf32>
    %55 = arith.index_cast %49 : i32 to index
    %c0_31 = arith.constant 0 : index
    %56 = vector.load %arg8[%55, %c0_31] : memref<64x128xf32, #tpu.memory_space<vmem>>, vector<8x128xf32>
    tpu.vector_store %arg8[%55, %c0_31], %54 {strides = array<i32>} : memref<64x128xf32, #tpu.memory_space<vmem>>, vector<8x128xf32>,
    %c5_i32 = arith.constant 5 : i32
    %c8_i32_32 = arith.constant 8 : i32
    %57 = arith.muli %c5_i32, %c8_i32_32 : i32
    %58 = tpu.assume_multiple %57, 8 : i32
    %59 = arith.index_cast %58 : i32 to index
    %c0_33 = arith.constant 0 : index
    %60 = vector.load %arg8[%59, %c0_33] : memref<64x128xf32, #tpu.memory_space<vmem>>, vector<8x128xf32>
    %cst_34 = arith.constant dense<0.000000e+00> : vector<8x128xf32>
    %61 = tpu.matmul %54, %10, %cst_34 {dimension_numbers = #tpu.dot_dimension_numbers<[1], [0], [0], [1], [0, 0, 1, 1], [], []>} : vector<8x128xf32>, vector<128x128xf32>, vector<8x128xf32> -> vector<8x128xf32>
    %62 = arith.addf %60, %61 : vector<8x128xf32>
    %63 = math.tanh %62 : vector<8x128xf32>
    %64 = arith.index_cast %58 : i32 to index
    %c0_35 = arith.constant 0 : index
    %65 = vector.load %arg8[%64, %c0_35] : memref<64x128xf32, #tpu.memory_space<vmem>>, vector<8x128xf32>
    tpu.vector_store %arg8[%64, %c0_35], %63 {strides = array<i32>} : memref<64x128xf32, #tpu.memory_space<vmem>>, vector<8x128xf32>,
    %c6_i32 = arith.constant 6 : i32
    %c8_i32_36 = arith.constant 8 : i32
    %66 = arith.muli %c6_i32, %c8_i32_36 : i32
    %67 = tpu.assume_multiple %66, 8 : i32
    %68 = arith.index_cast %67 : i32 to index
    %c0_37 = arith.constant 0 : index
    %69 = vector.load %arg8[%68, %c0_37] : memref<64x128xf32, #tpu.memory_space<vmem>>, vector<8x128xf32>
    %cst_38 = arith.constant dense<0.000000e+00> : vector<8x128xf32>
    %70 = tpu.matmul %63, %10, %cst_38 {dimension_numbers = #tpu.dot_dimension_numbers<[1], [0], [0], [1], [0, 0, 1, 1], [], []>} : vector<8x128xf32>, vector<128x128xf32>, vector<8x128xf32> -> vector<8x128xf32>
    %71 = arith.addf %69, %70 : vector<8x128xf32>
    %72 = math.tanh %71 : vector<8x128xf32>
    %73 = arith.index_cast %67 : i32 to index
    %c0_39 = arith.constant 0 : index
    %74 = vector.load %arg8[%73, %c0_39] : memref<64x128xf32, #tpu.memory_space<vmem>>, vector<8x128xf32>
    tpu.vector_store %arg8[%73, %c0_39], %72 {strides = array<i32>} : memref<64x128xf32, #tpu.memory_space<vmem>>, vector<8x128xf32>,
    %c7_i32 = arith.constant 7 : i32
    %c8_i32_40 = arith.constant 8 : i32
    %75 = arith.muli %c7_i32, %c8_i32_40 : i32
    %76 = tpu.assume_multiple %75, 8 : i32
    %77 = arith.index_cast %76 : i32 to index
    %c0_41 = arith.constant 0 : index
    %78 = vector.load %arg8[%77, %c0_41] : memref<64x128xf32, #tpu.memory_space<vmem>>, vector<8x128xf32>
    %cst_42 = arith.constant dense<0.000000e+00> : vector<8x128xf32>
    %79 = tpu.matmul %72, %10, %cst_42 {dimension_numbers = #tpu.dot_dimension_numbers<[1], [0], [0], [1], [0, 0, 1, 1], [], []>} : vector<8x128xf32>, vector<128x128xf32>, vector<8x128xf32> -> vector<8x128xf32>
    %80 = arith.addf %78, %79 : vector<8x128xf32>
    %81 = math.tanh %80 : vector<8x128xf32>
    %82 = arith.index_cast %76 : i32 to index
    %c0_43 = arith.constant 0 : index
    %83 = vector.load %arg8[%82, %c0_43] : memref<64x128xf32, #tpu.memory_space<vmem>>, vector<8x128xf32>
    tpu.vector_store %arg8[%82, %c0_43], %81 {strides = array<i32>} : memref<64x128xf32, #tpu.memory_space<vmem>>, vector<8x128xf32>,
    %c8_i32_44 = arith.constant 8 : i32
    %c0_45 = arith.constant 0 : index
    %c0_46 = arith.constant 0 : index
    %84 = vector.load %arg9[%c0_45, %c0_46] : memref<8x128xf32, #tpu.memory_space<vmem>>, vector<8x128xf32>
    tpu.vector_store %arg9[%c0_45, %c0_46], %81 {strides = array<i32>} : memref<8x128xf32, #tpu.memory_space<vmem>>, vector<8x128xf32>,
    %c0_47 = arith.constant 0 : index
    %c0_48 = arith.constant 0 : index
    %85 = vector.load %arg8[%c0_47, %c0_48] : memref<64x128xf32, #tpu.memory_space<vmem>>, vector<64x128xf32>
    %c0_49 = arith.constant 0 : index
    %c0_50 = arith.constant 0 : index
    %86 = vector.load %arg5[%c0_49, %c0_50] : memref<1x128xf32, #tpu.memory_space<vmem>>, vector<1x128xf32>
    %cst_51 = arith.constant dense<0.000000e+00> : vector<1x64xf32>
    %87 = tpu.matmul %86, %85, %cst_51 {dimension_numbers = #tpu.dot_dimension_numbers<[1], [1], [0], [0], [0, 0, 1, 0], [], []>} : vector<1x128xf32>, vector<64x128xf32>, vector<1x64xf32> -> vector<1x64xf32>
    %c0_52 = arith.constant 0 : index
    %c0_53 = arith.constant 0 : index
    %88 = vector.load %arg6[%c0_52, %c0_53] : memref<1x1xf32, #tpu.memory_space<vmem>>, vector<1x1xf32>
    %89 = vector.broadcast %88 : vector<1x1xf32> to vector<1x64xf32>
    %90 = arith.addf %87, %89 : vector<1x64xf32>
    %c0_54 = arith.constant 0 : index
    %c0_55 = arith.constant 0 : index
    %91 = vector.load %arg7[%c0_54, %c0_55] : memref<1x64xf32, #tpu.memory_space<vmem>>, vector<1x64xf32>
    tpu.vector_store %arg7[%c0_54, %c0_55], %90 {strides = array<i32>} : memref<1x64xf32, #tpu.memory_space<vmem>>, vector<1x64xf32>,
    return
  }
  func.func @transform_0(%arg0: i32) -> (i32, i32) {
    %c0_i32 = arith.constant 0 : i32
    %c0_i32_0 = arith.constant 0 : i32
    return %arg0, %c0_i32 : i32, i32
  }
  func.func @transform_1(%arg0: i32) -> (i32, i32) {
    %c0_i32 = arith.constant 0 : i32
    %c0_i32_0 = arith.constant 0 : i32
    %c0_i32_1 = arith.constant 0 : i32
    return %c0_i32, %c0_i32_0 : i32, i32
  }
  func.func @transform_2(%arg0: i32) -> (i32, i32) {
    %c0_i32 = arith.constant 0 : i32
    %c0_i32_0 = arith.constant 0 : i32
    %c0_i32_1 = arith.constant 0 : i32
    return %c0_i32, %c0_i32_0 : i32, i32
  }
  func.func @transform_3(%arg0: i32) -> (i32, i32) {
    %c0_i32 = arith.constant 0 : i32
    %c0_i32_0 = arith.constant 0 : i32
    %c0_i32_1 = arith.constant 0 : i32
    return %c0_i32, %c0_i32_0 : i32, i32
  }
  func.func @transform_4(%arg0: i32) -> (i32, i32) {
    %c0_i32 = arith.constant 0 : i32
    %c0_i32_0 = arith.constant 0 : i32
    %c0_i32_1 = arith.constant 0 : i32
    return %c0_i32, %c0_i32_0 : i32, i32
  }
  func.func @transform_5(%arg0: i32) -> (i32, i32) {
    %c0_i32 = arith.constant 0 : i32
    %c0_i32_0 = arith.constant 0 : i32
    %c0_i32_1 = arith.constant 0 : i32
    return %c0_i32, %c0_i32_0 : i32, i32
  }
  func.func @transform_6(%arg0: i32) -> (i32, i32) {
    %c0_i32 = arith.constant 0 : i32
    %c0_i32_0 = arith.constant 0 : i32
    return %c0_i32, %arg0 : i32, i32
  }
}

</mosaic_0001>

<llo_original>
// kernel: rnn_model_forward.1
$region0: #{rnn_model_forward.1}
  #allocation0 [shape = 'u32[]', space=smem, size = 0x4, offset = 0x4, fixed_abs, tag = 'smem constant byte address 0x4 - core index']
  #allocation1 [shape = 'u32[144,128]{1,0:T(1,128)}', space=vmem, size = 0x12000, scoped, tag = 'internal scratch']
  #allocation2 [shape = 'f32[64,128]{1,0:T(8,128)}', space=vmem, size = 0x8000, scoped, tag = 'scratch operand']
  #allocation3 [shape = 'f32[8,128]{1,0:T(8,128)}', space=vmem, size = 0x1000, scoped, tag = 'scratch operand']
  #allocation4 [shape = 'f32[1,1]{1,0:T(1,128)S(1)}', space=vmem, size = 0x200, scoped, tag = 'scoped memory for rnn_model_forward.1']
  %s0 = inlined_call_operand.vmem [shape: f32[64,8], index: 0, kind: input, shape index: {}]
  %s1 = inlined_call_operand.vmem [shape: f32[8,128], index: 1, kind: input, shape index: {}]
  %s2 = inlined_call_operand.vmem [shape: f32[128,128], index: 2, kind: input, shape index: {}]
  %s3 = inlined_call_operand.vmem [shape: f32[1,128], index: 3, kind: input, shape index: {}]
  %s4 = inlined_call_operand.vmem [shape: f32[1,128], index: 4, kind: input, shape index: {}]
  %s5 = inlined_call_operand.<no memory space> [shape: f32[1,1], index: 5, kind: input, shape index: {}]
  %s6 = inlined_call_operand.vmem [shape: f32[1,64], index: 6, kind: output, shape index: {}]
  %s7 = sld [smem:[#allocation0]]
  $region38: #{rnn_model_forward.1} parent=0
    _
  %s9 = ssub.s32 1, %s7
  %s10 = scalar_select 0, %s9, %s7
  %v11 = vstv %s5
  %12 = vst [vmem:[#allocation4] sm:$0x1] %v11
  // Predicated region
  $region2: #{rnn_model_forward.1} parent=0 // pred_check
    _
  $region3: #{rnn_model_forward.1} parent=0 // pred_check_branch
    %14 = sbr.rel (0) target = $region5
  $region4: #{rnn_model_forward.1} parent=0 // pred_region
    _
  $region5: #{rnn_model_forward.1} parent=0 // pred_fallthru
    _
  // Predicated region
  $region6: #{rnn_model_forward.1} parent=0 // pred_check
    _
  $region7: #{rnn_model_forward.1} parent=0 // pred_check_branch
    %16 = sbr.rel (0) target = $region9
  $region8: #{rnn_model_forward.1} parent=0 // pred_region
    _
  $region9: #{rnn_model_forward.1} parent=0 // pred_fallthru
    _
  // Predicated region
  $region10: #{rnn_model_forward.1} parent=0 // pred_check
    _
  $region11: #{rnn_model_forward.1} parent=0 // pred_check_branch
    %18 = sbr.rel (0) target = $region13
  $region12: #{rnn_model_forward.1} parent=0 // pred_region
    _
  $region13: #{rnn_model_forward.1} parent=0 // pred_fallthru
    _
  // Predicated region
  $region14: #{rnn_model_forward.1} parent=0 // pred_check
    _
  $region15: #{rnn_model_forward.1} parent=0 // pred_check_branch
    %20 = sbr.rel (0) target = $region17
  $region16: #{rnn_model_forward.1} parent=0 // pred_region
    _
  $region17: #{rnn_model_forward.1} parent=0 // pred_fallthru
    _
  // Predicated region
  $region18: #{rnn_model_forward.1} parent=0 // pred_check
    _
  $region19: #{rnn_model_forward.1} parent=0 // pred_check_branch
    %22 = sbr.rel (0) target = $region21
  $region20: #{rnn_model_forward.1} parent=0 // pred_region
    _
  $region21: #{rnn_model_forward.1} parent=0 // pred_fallthru
    _
  // Predicated region
  $region22: #{rnn_model_forward.1} parent=0 // pred_check
    _
  $region23: #{rnn_model_forward.1} parent=0 // pred_check_branch
    %24 = sbr.rel (0) target = $region25
  $region24: #{rnn_model_forward.1} parent=0 // pred_region
    _
  $region25: #{rnn_model_forward.1} parent=0 // pred_fallthru
    _
  %p25 = scmp.eq.s32.totalorder 0, 0
  // Predicated region
  $region26: #{rnn_model_forward.1} parent=0 // pred_check
    %p26 = pneg %p25
  $region27: #{rnn_model_forward.1} parent=0 // pred_check_branch
    %28 = sbr.rel (%p26) target = $region29
  $region28: #{rnn_model_forward.1} parent=0 // pred_region
    %29 = vst [vmem:[#allocation3] sm:$0xff] 0.0
  $region29: #{rnn_model_forward.1} parent=0 // pred_fallthru
    _
  %v30 = vld [vmem:[%s0] sm:$0xff]
  %v31 = vld [vmem:[%s0 + $0x8] sm:$0xff]
  %v32 = vld [vmem:[%s0 + $0x10] sm:$0xff]
  %v33 = vld [vmem:[%s0 + $0x18] sm:$0xff]
  %v34 = vld [vmem:[%s0 + $0x20] sm:$0xff]
  %v35 = vld [vmem:[%s0 + $0x28] sm:$0xff]
  %v36 = vld [vmem:[%s0 + $0x30] sm:$0xff]
  %v37 = vld [vmem:[%s0 + $0x38] sm:$0xff]
  %v38 = vld [vmem:[%s1] sm:$0xff]
  %v39 = vld [vmem:[%s3] sm:$0x1]
  %v41 = vlaneseq
  %v42 = vshrl.u32 %v41, 7
  %v43 = vsub.s32 0, %v42
  %v44 = vrot.slane %v39, %v43
  %vm46 = vcmask 64512
  %v48 = vsel %vm46, %v30, 0
  %v51 = vsel %vm46, %v31, 0
  %v54 = vsel %vm46, %v32, 0
  %v57 = vsel %vm46, %v33, 0
  %v60 = vsel %vm46, %v34, 0
  %v63 = vsel %vm46, %v35, 0
  %v66 = vsel %vm46, %v36, 0
  %v69 = vsel %vm46, %v37, 0
  %71 = vmatprep.subr.mxu0 0.0
  %72 = vmatpush1.msra.mxu0 0.0
  %73 = vmatprep.subr.mxu0 0.0
  %74 = vmatpush1.msra.mxu0 0.0
  %75 = vmatprep.subr.mxu0 0.0
  %76 = vmatpush1.msra.mxu0 0.0
  %77 = vmatprep.subr.mxu0 0.0
  %78 = vmatpush1.msra.mxu0 0.0
  %79 = vmatprep.subr.mxu0 0.0
  %80 = vmatpush1.msra.mxu0 0.0
  %81 = vmatprep.subr.mxu0 0.0
  %82 = vmatpush1.msra.mxu0 0.0
  %83 = vmatprep.subr.mxu0 0.0
  %84 = vmatpush1.msra.mxu0 0.0
  %85 = vmatprep.subr.mxu0 0.0
  %86 = vmatpush1.msra.mxu0 0.0
  %87 = vmatprep.subr.mxu0 0.0
  %88 = vmatpush1.msra.mxu0 0.0
  %89 = vmatprep.subr.mxu0 0.0
  %90 = vmatpush1.msra.mxu0 0.0
  %91 = vmatprep.subr.mxu0 0.0
  %92 = vmatpush1.msra.mxu0 0.0
  %93 = vmatprep.subr.mxu0 0.0
  %94 = vmatpush1.msra.mxu0 0.0
  %95 = vmatprep.subr.mxu0 0.0
  %96 = vmatpush1.msra.mxu0 0.0
  %97 = vmatprep.subr.mxu0 0.0
  %98 = vmatpush1.msra.mxu0 0.0
  %99 = vmatprep.subr.mxu0 0.0
  %100 = vmatpush1.msra.mxu0 0.0
  %101 = vmatprep.subr.mxu0 0.0
  %102 = vmatpush1.msra.mxu0 %v38
  %103 = vmatprep.subr.mxu0 0.0
  %104 = vmatpush2.msra.mxu0 0.0
  %105 = vmatprep.subr.mxu0 0.0
  %106 = vmatpush2.msra.mxu0 0.0
  %107 = vmatprep.subr.mxu0 0.0
  %108 = vmatpush2.msra.mxu0 0.0
  %109 = vmatprep.subr.mxu0 0.0
  %110 = vmatpush2.msra.mxu0 0.0
  %111 = vmatprep.subr.mxu0 0.0
  %112 = vmatpush2.msra.mxu0 0.0
  %113 = vmatprep.subr.mxu0 0.0
  %114 = vmatpush2.msra.mxu0 0.0
  %115 = vmatprep.subr.mxu0 0.0
  %116 = vmatpush2.msra.mxu0 0.0
  %117 = vmatprep.subr.mxu0 0.0
  %118 = vmatpush2.msra.mxu0 0.0
  %119 = vmatprep.subr.mxu0 0.0
  %120 = vmatpush2.msra.mxu0 0.0
  %121 = vmatprep.subr.mxu0 0.0
  %122 = vmatpush2.msra.mxu0 0.0
  %123 = vmatprep.subr.mxu0 0.0
  %124 = vmatpush2.msra.mxu0 0.0
  %125 = vmatprep.subr.mxu0 0.0
  %126 = vmatpush2.msra.mxu0 0.0
  %127 = vmatprep.subr.mxu0 0.0
  %128 = vmatpush2.msra.mxu0 0.0
  %129 = vmatprep.subr.mxu0 0.0
  %130 = vmatpush2.msra.mxu0 0.0
  %131 = vmatprep.subr.mxu0 0.0
  %132 = vmatpush2.msra.mxu0 0.0
  %133 = vmatprep.subr.mxu0 0.0
  %134 = vmatpush2.msra.mxu0 0.0
  %135 = vmatprep.mubr.f32.mxu0 0.0
  %136 = vmatmul.mubr.f32.gmra.mxu0 %v48
  %v137 = vpop.f32.mrf.mxu0
  %v138 = vadd.f32 %v44, %v137
  %v139 = vpop.f32.mrf.mxu0
  %140 = vmatprep.mubr.f32.mxu0 0.0
  %141 = vmatmul.mubr.f32.gmra.mxu0 %v51
  %v142 = vpop.f32.mrf.mxu0
  %v143 = vadd.f32 %v44, %v142
  %v144 = vpop.f32.mrf.mxu0
  %145 = vmatprep.mubr.f32.mxu0 0.0
  %146 = vmatmul.mubr.f32.gmra.mxu0 %v54
  %v147 = vpop.f32.mrf.mxu0
  %v148 = vadd.f32 %v44, %v147
  %v149 = vpop.f32.mrf.mxu0
  %150 = vmatprep.mubr.f32.mxu0 0.0
  %151 = vmatmul.mubr.f32.gmra.mxu0 %v57
  %v152 = vpop.f32.mrf.mxu0
  %v153 = vadd.f32 %v44, %v152
  %v154 = vpop.f32.mrf.mxu0
  %155 = vmatprep.mubr.f32.mxu0 0.0
  %156 = vmatmul.mubr.f32.gmra.mxu0 %v60
  %v157 = vpop.f32.mrf.mxu0
  %v158 = vadd.f32 %v44, %v157
  %v159 = vpop.f32.mrf.mxu0
  %160 = vmatprep.mubr.f32.mxu0 0.0
  %161 = vmatmul.mubr.f32.gmra.mxu0 %v63
  %v162 = vpop.f32.mrf.mxu0
  %v163 = vadd.f32 %v44, %v162
  %v164 = vpop.f32.mrf.mxu0
  %165 = vmatprep.mubr.f32.mxu0 0.0
  %166 = vmatmul.mubr.f32.gmra.mxu0 %v66
  %v167 = vpop.f32.mrf.mxu0
  %v168 = vadd.f32 %v44, %v167
  %v169 = vpop.f32.mrf.mxu0
  %170 = vmatprep.mubr.f32.mxu0 0.0
  %171 = vmatmul.mubr.f32.gmra.mxu0 %v69
  %v172 = vpop.f32.mrf.mxu0
  %v173 = vadd.f32 %v44, %v172
  %v174 = vpop.f32.mrf.mxu0
  %175 = vdwg.mxu0
  %176 = vst [vmem:[#allocation2] sm:$0xff] %v138
  %177 = vst [vmem:[#allocation2 + $0x8] sm:$0xff] %v143
  %178 = vst [vmem:[#allocation2 + $0x10] sm:$0xff] %v148
  %179 = vst [vmem:[#allocation2 + $0x18] sm:$0xff] %v153
  %180 = vst [vmem:[#allocation2 + $0x20] sm:$0xff] %v158
  %181 = vst [vmem:[#allocation2 + $0x28] sm:$0xff] %v163
  %182 = vst [vmem:[#allocation2 + $0x30] sm:$0xff] %v168
  %183 = vst [vmem:[#allocation2 + $0x38] sm:$0xff] %v173
  %v184 = vld [vmem:[%s2] sm:$0xff]
  %v185 = vld [vmem:[%s2 + $0x8] sm:$0xff]
  %v186 = vld [vmem:[%s2 + $0x10] sm:$0xff]
  %v187 = vld [vmem:[%s2 + $0x18] sm:$0xff]
  %v188 = vld [vmem:[%s2 + $0x20] sm:$0xff]
  %v189 = vld [vmem:[%s2 + $0x28] sm:$0xff]
  %v190 = vld [vmem:[%s2 + $0x30] sm:$0xff]
  %v191 = vld [vmem:[%s2 + $0x38] sm:$0xff]
  %v192 = vld [vmem:[%s2 + $0x40] sm:$0xff]
  %v193 = vld [vmem:[%s2 + $0x48] sm:$0xff]
  %v194 = vld [vmem:[%s2 + $0x50] sm:$0xff]
  %v195 = vld [vmem:[%s2 + $0x58] sm:$0xff]
  %v196 = vld [vmem:[%s2 + $0x60] sm:$0xff]
  %v197 = vld [vmem:[%s2 + $0x68] sm:$0xff]
  %v198 = vld [vmem:[%s2 + $0x70] sm:$0xff]
  %v199 = vld [vmem:[%s2 + $0x78] sm:$0xff]
  %v200 = vld [vmem:[#allocation3] sm:$0xff]
  %v201 = vld [vmem:[#allocation2] sm:$0xff]
  %202 = vmatprep.subr.mxu0 0.0
  %203 = vmatpush1.msra.mxu0 %v199
  %204 = vmatprep.subr.mxu0 0.0
  %205 = vmatpush1.msra.mxu0 %v198
  %206 = vmatprep.subr.mxu0 0.0
  %207 = vmatpush1.msra.mxu0 %v197
  %208 = vmatprep.subr.mxu0 0.0
  %209 = vmatpush1.msra.mxu0 %v196
  %210 = vmatprep.subr.mxu0 0.0
  %211 = vmatpush1.msra.mxu0 %v195
  %212 = vmatprep.subr.mxu0 0.0
  %213 = vmatpush1.msra.mxu0 %v194
  %214 = vmatprep.subr.mxu0 0.0
  %215 = vmatpush1.msra.mxu0 %v193
  %216 = vmatprep.subr.mxu0 0.0
  %217 = vmatpush1.msra.mxu0 %v192
  %218 = vmatprep.subr.mxu0 0.0
  %219 = vmatpush1.msra.mxu0 %v191
  %220 = vmatprep.subr.mxu0 0.0
  %221 = vmatpush1.msra.mxu0 %v190
  %222 = vmatprep.subr.mxu0 0.0
  %223 = vmatpush1.msra.mxu0 %v189
  %224 = vmatprep.subr.mxu0 0.0
  %225 = vmatpush1.msra.mxu0 %v188
  %226 = vmatprep.subr.mxu0 0.0
  %227 = vmatpush1.msra.mxu0 %v187
  %228 = vmatprep.subr.mxu0 0.0
  %229 = vmatpush1.msra.mxu0 %v186
  %230 = vmatprep.subr.mxu0 0.0
  %231 = vmatpush1.msra.mxu0 %v185
  %232 = vmatprep.subr.mxu0 0.0
  %233 = vmatpush1.msra.mxu0 %v184
  %234 = vmatprep.subr.mxu0 0.0
  %235 = vmatpush2.msra.mxu0 0.0
  %236 = vmatprep.subr.mxu0 0.0
  %237 = vmatpush2.msra.mxu0 0.0
  %238 = vmatprep.subr.mxu0 0.0
  %239 = vmatpush2.msra.mxu0 0.0
  %240 = vmatprep.subr.mxu0 0.0
  %241 = vmatpush2.msra.mxu0 0.0
  %242 = vmatprep.subr.mxu0 0.0
  %243 = vmatpush2.msra.mxu0 0.0
  %244 = vmatprep.subr.mxu0 0.0
  %245 = vmatpush2.msra.mxu0 0.0
  %246 = vmatprep.subr.mxu0 0.0
  %247 = vmatpush2.msra.mxu0 0.0
  %248 = vmatprep.subr.mxu0 0.0
  %249 = vmatpush2.msra.mxu0 0.0
  %250 = vmatprep.subr.mxu0 0.0
  %251 = vmatpush2.msra.mxu0 0.0
  %252 = vmatprep.subr.mxu0 0.0
  %253 = vmatpush2.msra.mxu0 0.0
  %254 = vmatprep.subr.mxu0 0.0
  %255 = vmatpush2.msra.mxu0 0.0
  %256 = vmatprep.subr.mxu0 0.0
  %257 = vmatpush2.msra.mxu0 0.0
  %258 = vmatprep.subr.mxu0 0.0
  %259 = vmatpush2.msra.mxu0 0.0
  %260 = vmatprep.subr.mxu0 0.0
  %261 = vmatpush2.msra.mxu0 0.0
  %262 = vmatprep.subr.mxu0 0.0
  %263 = vmatpush2.msra.mxu0 0.0
  %264 = vmatprep.subr.mxu0 0.0
  %265 = vmatpush2.msra.mxu0 0.0
  %266 = vmatprep.mubr.f32.mxu0 0.0
  %267 = vmatmul.mubr.f32.gmra.mxu0 %v200
  %v268 = vpop.f32.mrf.mxu0
  %v269 = vadd.f32 0.0, %v268
  %v270 = vpop.f32.mrf.mxu0
  %271 = vdwg.mxu0
  %v272 = vadd.f32 %v201, %v269
  %v273 = vtanh.pop %v272
  %274 = vst [vmem:[#allocation2] sm:$0xff] %v273
  %s275 = scalar_lea.vmem [#allocation2], 8
  %v276 = vld [vmem:[%s275] sm:$0xff]
  %277 = vmatprep.subr.mxu0 0.0
  %278 = vmatpush1.msra.mxu0 %v199
  %279 = vmatprep.subr.mxu0 0.0
  %280 = vmatpush1.msra.mxu0 %v198
  %281 = vmatprep.subr.mxu0 0.0
  %282 = vmatpush1.msra.mxu0 %v197
  %283 = vmatprep.subr.mxu0 0.0
  %284 = vmatpush1.msra.mxu0 %v196
  %285 = vmatprep.subr.mxu0 0.0
  %286 = vmatpush1.msra.mxu0 %v195
  %287 = vmatprep.subr.mxu0 0.0
  %288 = vmatpush1.msra.mxu0 %v194
  %289 = vmatprep.subr.mxu0 0.0
  %290 = vmatpush1.msra.mxu0 %v193
  %291 = vmatprep.subr.mxu0 0.0
  %292 = vmatpush1.msra.mxu0 %v192
  %293 = vmatprep.subr.mxu0 0.0
  %294 = vmatpush1.msra.mxu0 %v191
  %295 = vmatprep.subr.mxu0 0.0
  %296 = vmatpush1.msra.mxu0 %v190
  %297 = vmatprep.subr.mxu0 0.0
  %298 = vmatpush1.msra.mxu0 %v189
  %299 = vmatprep.subr.mxu0 0.0
  %300 = vmatpush1.msra.mxu0 %v188
  %301 = vmatprep.subr.mxu0 0.0
  %302 = vmatpush1.msra.mxu0 %v187
  %303 = vmatprep.subr.mxu0 0.0
  %304 = vmatpush1.msra.mxu0 %v186
  %305 = vmatprep.subr.mxu0 0.0
  %306 = vmatpush1.msra.mxu0 %v185
  %307 = vmatprep.subr.mxu0 0.0
  %308 = vmatpush1.msra.mxu0 %v184
  %309 = vmatprep.subr.mxu0 0.0
  %310 = vmatpush2.msra.mxu0 0.0
  %311 = vmatprep.subr.mxu0 0.0
  %312 = vmatpush2.msra.mxu0 0.0
  %313 = vmatprep.subr.mxu0 0.0
  %314 = vmatpush2.msra.mxu0 0.0
  %315 = vmatprep.subr.mxu0 0.0
  %316 = vmatpush2.msra.mxu0 0.0
  %317 = vmatprep.subr.mxu0 0.0
  %318 = vmatpush2.msra.mxu0 0.0
  %319 = vmatprep.subr.mxu0 0.0
  %320 = vmatpush2.msra.mxu0 0.0
  %321 = vmatprep.subr.mxu0 0.0
  %322 = vmatpush2.msra.mxu0 0.0
  %323 = vmatprep.subr.mxu0 0.0
  %324 = vmatpush2.msra.mxu0 0.0
  %325 = vmatprep.subr.mxu0 0.0
  %326 = vmatpush2.msra.mxu0 0.0
  %327 = vmatprep.subr.mxu0 0.0
  %328 = vmatpush2.msra.mxu0 0.0
  %329 = vmatprep.subr.mxu0 0.0
  %330 = vmatpush2.msra.mxu0 0.0
  %331 = vmatprep.subr.mxu0 0.0
  %332 = vmatpush2.msra.mxu0 0.0
  %333 = vmatprep.subr.mxu0 0.0
  %334 = vmatpush2.msra.mxu0 0.0
  %335 = vmatprep.subr.mxu0 0.0
  %336 = vmatpush2.msra.mxu0 0.0
  %337 = vmatprep.subr.mxu0 0.0
  %338 = vmatpush2.msra.mxu0 0.0
  %339 = vmatprep.subr.mxu0 0.0
  %340 = vmatpush2.msra.mxu0 0.0
  %341 = vmatprep.mubr.f32.mxu0 0.0
  %342 = vmatmul.mubr.f32.gmra.mxu0 %v273
  %v343 = vpop.f32.mrf.mxu0
  %v344 = vadd.f32 0.0, %v343
  %v345 = vpop.f32.mrf.mxu0
  %346 = vdwg.mxu0
  %v347 = vadd.f32 %v276, %v344
  %v348 = vtanh.pop %v347
  %349 = vst [vmem:[%s275] sm:$0xff] %v348
  %s350 = scalar_lea.vmem [#allocation2], 16
  %v351 = vld [vmem:[%s350] sm:$0xff]
  %352 = vmatprep.subr.mxu0 0.0
  %353 = vmatpush1.msra.mxu0 %v199
  %354 = vmatprep.subr.mxu0 0.0
  %355 = vmatpush1.msra.mxu0 %v198
  %356 = vmatprep.subr.mxu0 0.0
  %357 = vmatpush1.msra.mxu0 %v197
  %358 = vmatprep.subr.mxu0 0.0
  %359 = vmatpush1.msra.mxu0 %v196
  %360 = vmatprep.subr.mxu0 0.0
  %361 = vmatpush1.msra.mxu0 %v195
  %362 = vmatprep.subr.mxu0 0.0
  %363 = vmatpush1.msra.mxu0 %v194
  %364 = vmatprep.subr.mxu0 0.0
  %365 = vmatpush1.msra.mxu0 %v193
  %366 = vmatprep.subr.mxu0 0.0
  %367 = vmatpush1.msra.mxu0 %v192
  %368 = vmatprep.subr.mxu0 0.0
  %369 = vmatpush1.msra.mxu0 %v191
  %370 = vmatprep.subr.mxu0 0.0
  %371 = vmatpush1.msra.mxu0 %v190
  %372 = vmatprep.subr.mxu0 0.0
  %373 = vmatpush1.msra.mxu0 %v189
  %374 = vmatprep.subr.mxu0 0.0
  %375 = vmatpush1.msra.mxu0 %v188
  %376 = vmatprep.subr.mxu0 0.0
  %377 = vmatpush1.msra.mxu0 %v187
  %378 = vmatprep.subr.mxu0 0.0
  %379 = vmatpush1.msra.mxu0 %v186
  %380 = vmatprep.subr.mxu0 0.0
  %381 = vmatpush1.msra.mxu0 %v185
  %382 = vmatprep.subr.mxu0 0.0
  %383 = vmatpush1.msra.mxu0 %v184
  %384 = vmatprep.subr.mxu0 0.0
  %385 = vmatpush2.msra.mxu0 0.0
  %386 = vmatprep.subr.mxu0 0.0
  %387 = vmatpush2.msra.mxu0 0.0
  %388 = vmatprep.subr.mxu0 0.0
  %389 = vmatpush2.msra.mxu0 0.0
  %390 = vmatprep.subr.mxu0 0.0
  %391 = vmatpush2.msra.mxu0 0.0
  %392 = vmatprep.subr.mxu0 0.0
  %393 = vmatpush2.msra.mxu0 0.0
  %394 = vmatprep.subr.mxu0 0.0
  %395 = vmatpush2.msra.mxu0 0.0
  %396 = vmatprep.subr.mxu0 0.0
  %397 = vmatpush2.msra.mxu0 0.0
  %398 = vmatprep.subr.mxu0 0.0
  %399 = vmatpush2.msra.mxu0 0.0
  %400 = vmatprep.subr.mxu0 0.0
  %401 = vmatpush2.msra.mxu0 0.0
  %402 = vmatprep.subr.mxu0 0.0
  %403 = vmatpush2.msra.mxu0 0.0
  %404 = vmatprep.subr.mxu0 0.0
  %405 = vmatpush2.msra.mxu0 0.0
  %406 = vmatprep.subr.mxu0 0.0
  %407 = vmatpush2.msra.mxu0 0.0
  %408 = vmatprep.subr.mxu0 0.0
  %409 = vmatpush2.msra.mxu0 0.0
  %410 = vmatprep.subr.mxu0 0.0
  %411 = vmatpush2.msra.mxu0 0.0
  %412 = vmatprep.subr.mxu0 0.0
  %413 = vmatpush2.msra.mxu0 0.0
  %414 = vmatprep.subr.mxu0 0.0
  %415 = vmatpush2.msra.mxu0 0.0
  %416 = vmatprep.mubr.f32.mxu0 0.0
  %417 = vmatmul.mubr.f32.gmra.mxu0 %v348
  %v418 = vpop.f32.mrf.mxu0
  %v419 = vadd.f32 0.0, %v418
  %v420 = vpop.f32.mrf.mxu0
  %421 = vdwg.mxu0
  %v422 = vadd.f32 %v351, %v419
  %v423 = vtanh.pop %v422
  %424 = vst [vmem:[%s350] sm:$0xff] %v423
  %s425 = scalar_lea.vmem [#allocation2], 24
  %v426 = vld [vmem:[%s425] sm:$0xff]
  %427 = vmatprep.subr.mxu0 0.0
  %428 = vmatpush1.msra.mxu0 %v199
  %429 = vmatprep.subr.mxu0 0.0
  %430 = vmatpush1.msra.mxu0 %v198
  %431 = vmatprep.subr.mxu0 0.0
  %432 = vmatpush1.msra.mxu0 %v197
  %433 = vmatprep.subr.mxu0 0.0
  %434 = vmatpush1.msra.mxu0 %v196
  %435 = vmatprep.subr.mxu0 0.0
  %436 = vmatpush1.msra.mxu0 %v195
  %437 = vmatprep.subr.mxu0 0.0
  %438 = vmatpush1.msra.mxu0 %v194
  %439 = vmatprep.subr.mxu0 0.0
  %440 = vmatpush1.msra.mxu0 %v193
  %441 = vmatprep.subr.mxu0 0.0
  %442 = vmatpush1.msra.mxu0 %v192
  %443 = vmatprep.subr.mxu0 0.0
  %444 = vmatpush1.msra.mxu0 %v191
  %445 = vmatprep.subr.mxu0 0.0
  %446 = vmatpush1.msra.mxu0 %v190
  %447 = vmatprep.subr.mxu0 0.0
  %448 = vmatpush1.msra.mxu0 %v189
  %449 = vmatprep.subr.mxu0 0.0
  %450 = vmatpush1.msra.mxu0 %v188
  %451 = vmatprep.subr.mxu0 0.0
  %452 = vmatpush1.msra.mxu0 %v187
  %453 = vmatprep.subr.mxu0 0.0
  %454 = vmatpush1.msra.mxu0 %v186
  %455 = vmatprep.subr.mxu0 0.0
  %456 = vmatpush1.msra.mxu0 %v185
  %457 = vmatprep.subr.mxu0 0.0
  %458 = vmatpush1.msra.mxu0 %v184
  %459 = vmatprep.subr.mxu0 0.0
  %460 = vmatpush2.msra.mxu0 0.0
  %461 = vmatprep.subr.mxu0 0.0
  %462 = vmatpush2.msra.mxu0 0.0
  %463 = vmatprep.subr.mxu0 0.0
  %464 = vmatpush2.msra.mxu0 0.0
  %465 = vmatprep.subr.mxu0 0.0
  %466 = vmatpush2.msra.mxu0 0.0
  %467 = vmatprep.subr.mxu0 0.0
  %468 = vmatpush2.msra.mxu0 0.0
  %469 = vmatprep.subr.mxu0 0.0
  %470 = vmatpush2.msra.mxu0 0.0
  %471 = vmatprep.subr.mxu0 0.0
  %472 = vmatpush2.msra.mxu0 0.0
  %473 = vmatprep.subr.mxu0 0.0
  %474 = vmatpush2.msra.mxu0 0.0
  %475 = vmatprep.subr.mxu0 0.0
  %476 = vmatpush2.msra.mxu0 0.0
  %477 = vmatprep.subr.mxu0 0.0
  %478 = vmatpush2.msra.mxu0 0.0
  %479 = vmatprep.subr.mxu0 0.0
  %480 = vmatpush2.msra.mxu0 0.0
  %481 = vmatprep.subr.mxu0 0.0
  %482 = vmatpush2.msra.mxu0 0.0
  %483 = vmatprep.subr.mxu0 0.0
  %484 = vmatpush2.msra.mxu0 0.0
  %485 = vmatprep.subr.mxu0 0.0
  %486 = vmatpush2.msra.mxu0 0.0
  %487 = vmatprep.subr.mxu0 0.0
  %488 = vmatpush2.msra.mxu0 0.0
  %489 = vmatprep.subr.mxu0 0.0
  %490 = vmatpush2.msra.mxu0 0.0
  %491 = vmatprep.mubr.f32.mxu0 0.0
  %492 = vmatmul.mubr.f32.gmra.mxu0 %v423
  %v493 = vpop.f32.mrf.mxu0
  %v494 = vadd.f32 0.0, %v493
  %v495 = vpop.f32.mrf.mxu0
  %496 = vdwg.mxu0
  %v497 = vadd.f32 %v426, %v494
  %v498 = vtanh.pop %v497
  %499 = vst [vmem:[%s425] sm:$0xff] %v498
  %s500 = scalar_lea.vmem [#allocation2], 32
  %v501 = vld [vmem:[%s500] sm:$0xff]
  %502 = vmatprep.subr.mxu0 0.0
  %503 = vmatpush1.msra.mxu0 %v199
  %504 = vmatprep.subr.mxu0 0.0
  %505 = vmatpush1.msra.mxu0 %v198
  %506 = vmatprep.subr.mxu0 0.0
  %507 = vmatpush1.msra.mxu0 %v197
  %508 = vmatprep.subr.mxu0 0.0
  %509 = vmatpush1.msra.mxu0 %v196
  %510 = vmatprep.subr.mxu0 0.0
  %511 = vmatpush1.msra.mxu0 %v195
  %512 = vmatprep.subr.mxu0 0.0
  %513 = vmatpush1.msra.mxu0 %v194
  %514 = vmatprep.subr.mxu0 0.0
  %515 = vmatpush1.msra.mxu0 %v193
  %516 = vmatprep.subr.mxu0 0.0
  %517 = vmatpush1.msra.mxu0 %v192
  %518 = vmatprep.subr.mxu0 0.0
  %519 = vmatpush1.msra.mxu0 %v191
  %520 = vmatprep.subr.mxu0 0.0
  %521 = vmatpush1.msra.mxu0 %v190
  %522 = vmatprep.subr.mxu0 0.0
  %523 = vmatpush1.msra.mxu0 %v189
  %524 = vmatprep.subr.mxu0 0.0
  %525 = vmatpush1.msra.mxu0 %v188
  %526 = vmatprep.subr.mxu0 0.0
  %527 = vmatpush1.msra.mxu0 %v187
  %528 = vmatprep.subr.mxu0 0.0
  %529 = vmatpush1.msra.mxu0 %v186
  %530 = vmatprep.subr.mxu0 0.0
  %531 = vmatpush1.msra.mxu0 %v185
  %532 = vmatprep.subr.mxu0 0.0
  %533 = vmatpush1.msra.mxu0 %v184
  %534 = vmatprep.subr.mxu0 0.0
  %535 = vmatpush2.msra.mxu0 0.0
  %536 = vmatprep.subr.mxu0 0.0
  %537 = vmatpush2.msra.mxu0 0.0
  %538 = vmatprep.subr.mxu0 0.0
  %539 = vmatpush2.msra.mxu0 0.0
  %540 = vmatprep.subr.mxu0 0.0
  %541 = vmatpush2.msra.mxu0 0.0
  %542 = vmatprep.subr.mxu0 0.0
  %543 = vmatpush2.msra.mxu0 0.0
  %544 = vmatprep.subr.mxu0 0.0
  %545 = vmatpush2.msra.mxu0 0.0
  %546 = vmatprep.subr.mxu0 0.0
  %547 = vmatpush2.msra.mxu0 0.0
  %548 = vmatprep.subr.mxu0 0.0
  %549 = vmatpush2.msra.mxu0 0.0
  %550 = vmatprep.subr.mxu0 0.0
  %551 = vmatpush2.msra.mxu0 0.0
  %552 = vmatprep.subr.mxu0 0.0
  %553 = vmatpush2.msra.mxu0 0.0
  %554 = vmatprep.subr.mxu0 0.0
  %555 = vmatpush2.msra.mxu0 0.0
  %556 = vmatprep.subr.mxu0 0.0
  %557 = vmatpush2.msra.mxu0 0.0
  %558 = vmatprep.subr.mxu0 0.0
  %559 = vmatpush2.msra.mxu0 0.0
  %560 = vmatprep.subr.mxu0 0.0
  %561 = vmatpush2.msra.mxu0 0.0
  %562 = vmatprep.subr.mxu0 0.0
  %563 = vmatpush2.msra.mxu0 0.0
  %564 = vmatprep.subr.mxu0 0.0
  %565 = vmatpush2.msra.mxu0 0.0
  %566 = vmatprep.mubr.f32.mxu0 0.0
  %567 = vmatmul.mubr.f32.gmra.mxu0 %v498
  %v568 = vpop.f32.mrf.mxu0
  %v569 = vadd.f32 0.0, %v568
  %v570 = vpop.f32.mrf.mxu0
  %571 = vdwg.mxu0
  %v572 = vadd.f32 %v501, %v569
  %v573 = vtanh.pop %v572
  %574 = vst [vmem:[%s500] sm:$0xff] %v573
  %s575 = scalar_lea.vmem [#allocation2], 40
  %v576 = vld [vmem:[%s575] sm:$0xff]
  %577 = vmatprep.subr.mxu0 0.0
  %578 = vmatpush1.msra.mxu0 %v199
  %579 = vmatprep.subr.mxu0 0.0
  %580 = vmatpush1.msra.mxu0 %v198
  %581 = vmatprep.subr.mxu0 0.0
  %582 = vmatpush1.msra.mxu0 %v197
  %583 = vmatprep.subr.mxu0 0.0
  %584 = vmatpush1.msra.mxu0 %v196
  %585 = vmatprep.subr.mxu0 0.0
  %586 = vmatpush1.msra.mxu0 %v195
  %587 = vmatprep.subr.mxu0 0.0
  %588 = vmatpush1.msra.mxu0 %v194
  %589 = vmatprep.subr.mxu0 0.0
  %590 = vmatpush1.msra.mxu0 %v193
  %591 = vmatprep.subr.mxu0 0.0
  %592 = vmatpush1.msra.mxu0 %v192
  %593 = vmatprep.subr.mxu0 0.0
  %594 = vmatpush1.msra.mxu0 %v191
  %595 = vmatprep.subr.mxu0 0.0
  %596 = vmatpush1.msra.mxu0 %v190
  %597 = vmatprep.subr.mxu0 0.0
  %598 = vmatpush1.msra.mxu0 %v189
  %599 = vmatprep.subr.mxu0 0.0
  %600 = vmatpush1.msra.mxu0 %v188
  %601 = vmatprep.subr.mxu0 0.0
  %602 = vmatpush1.msra.mxu0 %v187
  %603 = vmatprep.subr.mxu0 0.0
  %604 = vmatpush1.msra.mxu0 %v186
  %605 = vmatprep.subr.mxu0 0.0
  %606 = vmatpush1.msra.mxu0 %v185
  %607 = vmatprep.subr.mxu0 0.0
  %608 = vmatpush1.msra.mxu0 %v184
  %609 = vmatprep.subr.mxu0 0.0
  %610 = vmatpush2.msra.mxu0 0.0
  %611 = vmatprep.subr.mxu0 0.0
  %612 = vmatpush2.msra.mxu0 0.0
  %613 = vmatprep.subr.mxu0 0.0
  %614 = vmatpush2.msra.mxu0 0.0
  %615 = vmatprep.subr.mxu0 0.0
  %616 = vmatpush2.msra.mxu0 0.0
  %617 = vmatprep.subr.mxu0 0.0
  %618 = vmatpush2.msra.mxu0 0.0
  %619 = vmatprep.subr.mxu0 0.0
  %620 = vmatpush2.msra.mxu0 0.0
  %621 = vmatprep.subr.mxu0 0.0
  %622 = vmatpush2.msra.mxu0 0.0
  %623 = vmatprep.subr.mxu0 0.0
  %624 = vmatpush2.msra.mxu0 0.0
  %625 = vmatprep.subr.mxu0 0.0
  %626 = vmatpush2.msra.mxu0 0.0
  %627 = vmatprep.subr.mxu0 0.0
  %628 = vmatpush2.msra.mxu0 0.0
  %629 = vmatprep.subr.mxu0 0.0
  %630 = vmatpush2.msra.mxu0 0.0
  %631 = vmatprep.subr.mxu0 0.0
  %632 = vmatpush2.msra.mxu0 0.0
  %633 = vmatprep.subr.mxu0 0.0
  %634 = vmatpush2.msra.mxu0 0.0
  %635 = vmatprep.subr.mxu0 0.0
  %636 = vmatpush2.msra.mxu0 0.0
  %637 = vmatprep.subr.mxu0 0.0
  %638 = vmatpush2.msra.mxu0 0.0
  %639 = vmatprep.subr.mxu0 0.0
  %640 = vmatpush2.msra.mxu0 0.0
  %641 = vmatprep.mubr.f32.mxu0 0.0
  %642 = vmatmul.mubr.f32.gmra.mxu0 %v573
  %v643 = vpop.f32.mrf.mxu0
  %v644 = vadd.f32 0.0, %v643
  %v645 = vpop.f32.mrf.mxu0
  %646 = vdwg.mxu0
  %v647 = vadd.f32 %v576, %v644
  %v648 = vtanh.pop %v647
  %649 = vst [vmem:[%s575] sm:$0xff] %v648
  %s650 = scalar_lea.vmem [#allocation2], 48
  %v651 = vld [vmem:[%s650] sm:$0xff]
  %652 = vmatprep.subr.mxu0 0.0
  %653 = vmatpush1.msra.mxu0 %v199
  %654 = vmatprep.subr.mxu0 0.0
  %655 = vmatpush1.msra.mxu0 %v198
  %656 = vmatprep.subr.mxu0 0.0
  %657 = vmatpush1.msra.mxu0 %v197
  %658 = vmatprep.subr.mxu0 0.0
  %659 = vmatpush1.msra.mxu0 %v196
  %660 = vmatprep.subr.mxu0 0.0
  %661 = vmatpush1.msra.mxu0 %v195
  %662 = vmatprep.subr.mxu0 0.0
  %663 = vmatpush1.msra.mxu0 %v194
  %664 = vmatprep.subr.mxu0 0.0
  %665 = vmatpush1.msra.mxu0 %v193
  %666 = vmatprep.subr.mxu0 0.0
  %667 = vmatpush1.msra.mxu0 %v192
  %668 = vmatprep.subr.mxu0 0.0
  %669 = vmatpush1.msra.mxu0 %v191
  %670 = vmatprep.subr.mxu0 0.0
  %671 = vmatpush1.msra.mxu0 %v190
  %672 = vmatprep.subr.mxu0 0.0
  %673 = vmatpush1.msra.mxu0 %v189
  %674 = vmatprep.subr.mxu0 0.0
  %675 = vmatpush1.msra.mxu0 %v188
  %676 = vmatprep.subr.mxu0 0.0
  %677 = vmatpush1.msra.mxu0 %v187
  %678 = vmatprep.subr.mxu0 0.0
  %679 = vmatpush1.msra.mxu0 %v186
  %680 = vmatprep.subr.mxu0 0.0
  %681 = vmatpush1.msra.mxu0 %v185
  %682 = vmatprep.subr.mxu0 0.0
  %683 = vmatpush1.msra.mxu0 %v184
  %684 = vmatprep.subr.mxu0 0.0
  %685 = vmatpush2.msra.mxu0 0.0
  %686 = vmatprep.subr.mxu0 0.0
  %687 = vmatpush2.msra.mxu0 0.0
  %688 = vmatprep.subr.mxu0 0.0
  %689 = vmatpush2.msra.mxu0 0.0
  %690 = vmatprep.subr.mxu0 0.0
  %691 = vmatpush2.msra.mxu0 0.0
  %692 = vmatprep.subr.mxu0 0.0
  %693 = vmatpush2.msra.mxu0 0.0
  %694 = vmatprep.subr.mxu0 0.0
  %695 = vmatpush2.msra.mxu0 0.0
  %696 = vmatprep.subr.mxu0 0.0
  %697 = vmatpush2.msra.mxu0 0.0
  %698 = vmatprep.subr.mxu0 0.0
  %699 = vmatpush2.msra.mxu0 0.0
  %700 = vmatprep.subr.mxu0 0.0
  %701 = vmatpush2.msra.mxu0 0.0
  %702 = vmatprep.subr.mxu0 0.0
  %703 = vmatpush2.msra.mxu0 0.0
  %704 = vmatprep.subr.mxu0 0.0
  %705 = vmatpush2.msra.mxu0 0.0
  %706 = vmatprep.subr.mxu0 0.0
  %707 = vmatpush2.msra.mxu0 0.0
  %708 = vmatprep.subr.mxu0 0.0
  %709 = vmatpush2.msra.mxu0 0.0
  %710 = vmatprep.subr.mxu0 0.0
  %711 = vmatpush2.msra.mxu0 0.0
  %712 = vmatprep.subr.mxu0 0.0
  %713 = vmatpush2.msra.mxu0 0.0
  %714 = vmatprep.subr.mxu0 0.0
  %715 = vmatpush2.msra.mxu0 0.0
  %716 = vmatprep.mubr.f32.mxu0 0.0
  %717 = vmatmul.mubr.f32.gmra.mxu0 %v648
  %v718 = vpop.f32.mrf.mxu0
  %v719 = vadd.f32 0.0, %v718
  %v720 = vpop.f32.mrf.mxu0
  %721 = vdwg.mxu0
  %v722 = vadd.f32 %v651, %v719
  %v723 = vtanh.pop %v722
  %724 = vst [vmem:[%s650] sm:$0xff] %v723
  %s725 = scalar_lea.vmem [#allocation2], 56
  %v726 = vld [vmem:[%s725] sm:$0xff]
  %727 = vmatprep.subr.mxu0 0.0
  %728 = vmatpush1.msra.mxu0 %v199
  %729 = vmatprep.subr.mxu0 0.0
  %730 = vmatpush1.msra.mxu0 %v198
  %731 = vmatprep.subr.mxu0 0.0
  %732 = vmatpush1.msra.mxu0 %v197
  %733 = vmatprep.subr.mxu0 0.0
  %734 = vmatpush1.msra.mxu0 %v196
  %735 = vmatprep.subr.mxu0 0.0
  %736 = vmatpush1.msra.mxu0 %v195
  %737 = vmatprep.subr.mxu0 0.0
  %738 = vmatpush1.msra.mxu0 %v194
  %739 = vmatprep.subr.mxu0 0.0
  %740 = vmatpush1.msra.mxu0 %v193
  %741 = vmatprep.subr.mxu0 0.0
  %742 = vmatpush1.msra.mxu0 %v192
  %743 = vmatprep.subr.mxu0 0.0
  %744 = vmatpush1.msra.mxu0 %v191
  %745 = vmatprep.subr.mxu0 0.0
  %746 = vmatpush1.msra.mxu0 %v190
  %747 = vmatprep.subr.mxu0 0.0
  %748 = vmatpush1.msra.mxu0 %v189
  %749 = vmatprep.subr.mxu0 0.0
  %750 = vmatpush1.msra.mxu0 %v188
  %751 = vmatprep.subr.mxu0 0.0
  %752 = vmatpush1.msra.mxu0 %v187
  %753 = vmatprep.subr.mxu0 0.0
  %754 = vmatpush1.msra.mxu0 %v186
  %755 = vmatprep.subr.mxu0 0.0
  %756 = vmatpush1.msra.mxu0 %v185
  %757 = vmatprep.subr.mxu0 0.0
  %758 = vmatpush1.msra.mxu0 %v184
  %759 = vmatprep.subr.mxu0 0.0
  %760 = vmatpush2.msra.mxu0 0.0
  %761 = vmatprep.subr.mxu0 0.0
  %762 = vmatpush2.msra.mxu0 0.0
  %763 = vmatprep.subr.mxu0 0.0
  %764 = vmatpush2.msra.mxu0 0.0
  %765 = vmatprep.subr.mxu0 0.0
  %766 = vmatpush2.msra.mxu0 0.0
  %767 = vmatprep.subr.mxu0 0.0
  %768 = vmatpush2.msra.mxu0 0.0
  %769 = vmatprep.subr.mxu0 0.0
  %770 = vmatpush2.msra.mxu0 0.0
  %771 = vmatprep.subr.mxu0 0.0
  %772 = vmatpush2.msra.mxu0 0.0
  %773 = vmatprep.subr.mxu0 0.0
  %774 = vmatpush2.msra.mxu0 0.0
  %775 = vmatprep.subr.mxu0 0.0
  %776 = vmatpush2.msra.mxu0 0.0
  %777 = vmatprep.subr.mxu0 0.0
  %778 = vmatpush2.msra.mxu0 0.0
  %779 = vmatprep.subr.mxu0 0.0
  %780 = vmatpush2.msra.mxu0 0.0
  %781 = vmatprep.subr.mxu0 0.0
  %782 = vmatpush2.msra.mxu0 0.0
  %783 = vmatprep.subr.mxu0 0.0
  %784 = vmatpush2.msra.mxu0 0.0
  %785 = vmatprep.subr.mxu0 0.0
  %786 = vmatpush2.msra.mxu0 0.0
  %787 = vmatprep.subr.mxu0 0.0
  %788 = vmatpush2.msra.mxu0 0.0
  %789 = vmatprep.subr.mxu0 0.0
  %790 = vmatpush2.msra.mxu0 0.0
  %791 = vmatprep.mubr.f32.mxu0 0.0
  %792 = vmatmul.mubr.f32.gmra.mxu0 %v723
  %v793 = vpop.f32.mrf.mxu0
  %v794 = vadd.f32 0.0, %v793
  %v795 = vpop.f32.mrf.mxu0
  %796 = vdwg.mxu0
  %v797 = vadd.f32 %v726, %v794
  %v798 = vtanh.pop %v797
  %799 = vst [vmem:[%s725] sm:$0xff] %v798
  %800 = vst [vmem:[#allocation3] sm:$0xff] %v798
  %v801 = vld [vmem:[#allocation2] sm:$0xff]
  %v802 = vld [vmem:[#allocation2 + $0x8] sm:$0xff]
  %v803 = vld [vmem:[#allocation2 + $0x10] sm:$0xff]
  %v804 = vld [vmem:[#allocation2 + $0x18] sm:$0xff]
  %v805 = vld [vmem:[#allocation2 + $0x20] sm:$0xff]
  %v806 = vld [vmem:[#allocation2 + $0x28] sm:$0xff]
  %v807 = vld [vmem:[#allocation2 + $0x30] sm:$0xff]
  %v808 = vld [vmem:[#allocation2 + $0x38] sm:$0xff]
  %v809 = vld [vmem:[%s4] sm:$0x1]
  %v810 = vld [vmem:[#allocation4] sm:$0x1]
  %812 = vset.pattern.permute.xlu0 0
  %813 = vperm.xlu0 %812, %v810
  %v814 = vpop.permute.xlu0 %813
  %v816 = vlaneseq
  %v817 = vshrl.u32 %v816, 7
  %v818 = vsub.s32 0, %v817
  %v819 = vrot.slane %v814, %v818
  %820 = vmatprep.subr.mxu0 0.0
  %821 = vmatpush1.xpose.msra.mxu0 0.0
  %822 = vmatprep.subr.mxu0 0.0
  %823 = vmatpush1.xpose.msra.mxu0 0.0
  %824 = vmatprep.subr.mxu0 0.0
  %825 = vmatpush1.xpose.msra.mxu0 0.0
  %826 = vmatprep.subr.mxu0 0.0
  %827 = vmatpush1.xpose.msra.mxu0 0.0
  %828 = vmatprep.subr.mxu0 0.0
  %829 = vmatpush1.xpose.msra.mxu0 0.0
  %830 = vmatprep.subr.mxu0 0.0
  %831 = vmatpush1.xpose.msra.mxu0 0.0
  %832 = vmatprep.subr.mxu0 0.0
  %833 = vmatpush1.xpose.msra.mxu0 0.0
  %834 = vmatprep.subr.mxu0 0.0
  %835 = vmatpush1.xpose.msra.mxu0 0.0
  %836 = vmatprep.subr.mxu0 0.0
  %837 = vmatpush1.xpose.msra.mxu0 %v808
  %838 = vmatprep.subr.mxu0 0.0
  %839 = vmatpush1.xpose.msra.mxu0 %v807
  %840 = vmatprep.subr.mxu0 0.0
  %841 = vmatpush1.xpose.msra.mxu0 %v806
  %842 = vmatprep.subr.mxu0 0.0
  %843 = vmatpush1.xpose.msra.mxu0 %v805
  %844 = vmatprep.subr.mxu0 0.0
  %845 = vmatpush1.xpose.msra.mxu0 %v804
  %846 = vmatprep.subr.mxu0 0.0
  %847 = vmatpush1.xpose.msra.mxu0 %v803
  %848 = vmatprep.subr.mxu0 0.0
  %849 = vmatpush1.xpose.msra.mxu0 %v802
  %850 = vmatprep.subr.mxu0 0.0
  %851 = vmatpush1.xpose.msra.mxu0 %v801
  %852 = vmatprep.subr.mxu0 0.0
  %853 = vmatpush2.xpose.msra.mxu0 0.0
  %854 = vmatprep.subr.mxu0 0.0
  %855 = vmatpush2.xpose.msra.mxu0 0.0
  %856 = vmatprep.subr.mxu0 0.0
  %857 = vmatpush2.xpose.msra.mxu0 0.0
  %858 = vmatprep.subr.mxu0 0.0
  %859 = vmatpush2.xpose.msra.mxu0 0.0
  %860 = vmatprep.subr.mxu0 0.0
  %861 = vmatpush2.xpose.msra.mxu0 0.0
  %862 = vmatprep.subr.mxu0 0.0
  %863 = vmatpush2.xpose.msra.mxu0 0.0
  %864 = vmatprep.subr.mxu0 0.0
  %865 = vmatpush2.xpose.msra.mxu0 0.0
  %866 = vmatprep.subr.mxu0 0.0
  %867 = vmatpush2.xpose.msra.mxu0 0.0
  %868 = vmatprep.subr.mxu0 0.0
  %869 = vmatpush2.xpose.msra.mxu0 0.0
  %870 = vmatprep.subr.mxu0 0.0
  %871 = vmatpush2.xpose.msra.mxu0 0.0
  %872 = vmatprep.subr.mxu0 0.0
  %873 = vmatpush2.xpose.msra.mxu0 0.0
  %874 = vmatprep.subr.mxu0 0.0
  %875 = vmatpush2.xpose.msra.mxu0 0.0
  %876 = vmatprep.subr.mxu0 0.0
  %877 = vmatpush2.xpose.msra.mxu0 0.0
  %878 = vmatprep.subr.mxu0 0.0
  %879 = vmatpush2.xpose.msra.mxu0 0.0
  %880 = vmatprep.subr.mxu0 0.0
  %881 = vmatpush2.xpose.msra.mxu0 0.0
  %882 = vmatprep.subr.mxu0 0.0
  %883 = vmatpush2.xpose.msra.mxu0 0.0
  %884 = vmatprep.mubr.f32.mxu0 0.0
  %885 = vmatmul.mubr.f32.gmra.mxu0 %v809
  %v886 = vpop.f32.mrf.mxu0
  %v887 = vadd.f32 %v819, %v886
  %v888 = vpop.f32.mrf.mxu0
  %889 = vdwg.mxu0
  %vm890 = vcmask 516096
  %891 = vst.msk [vmem:[%s6] sm:$0x1] %vm890, %v887
  // Predicated region
  $region30: #{rnn_model_forward.1} parent=0 // pred_check
    _
  $region31: #{rnn_model_forward.1} parent=0 // pred_check_branch
    %893 = sbr.rel (0) target = $region33
  $region32: #{rnn_model_forward.1} parent=0 // pred_region
    _
  $region33: #{rnn_model_forward.1} parent=0 // pred_fallthru
    _
  // Predicated region
  $region34: #{rnn_model_forward.1} parent=0 // pred_check
    _
  $region35: #{rnn_model_forward.1} parent=0 // pred_check_branch
    %895 = sbr.rel (0) target = $region37
  $region36: #{rnn_model_forward.1} parent=0 // pred_region
    _
  $region37: #{rnn_model_forward.1} parent=0 // pred_fallthru
    _

</llo_original>
